<compile_context>
chip_gen: v6e
topology: v6e:2x2x1
jax: 0.10.0
libtpu: 0.0.40
codegen_flags: <defaults>
</compile_context>

<pallas_src>
import jax
import jax.numpy as jnp
from jax.experimental import pallas as pl
from jax.experimental.pallas import tpu as pltpu

_LANES = 128          # vreg lane width
_SUBLANES = 8         # vreg sublane count (f32)
_FMA_TILE_ROWS = 512  # (512, 128) f32 tile = 256 KiB per buffer
_MM_TILE_ROWS = 256   # batch rows per matmul tile (general path)


def _round_up(v, m):
    return ((v + m - 1) // m) * m


# ----------------------------- kernels --------------------------------------

def _fma_kernel(wb_ref, x_ref, o_ref):
    # wb_ref: (2,) f32 SMEM -> [w, b]
    # x_ref : (tile_rows, 128) f32 VMEM, lane-dense slab of batch samples
    # o_ref : (tile_rows, 128) f32 VMEM
    w = wb_ref[0]
    b = wb_ref[1]
    o_ref[...] = x_ref[...] * w + b


def _matmul_bias_kernel(x_ref, wt_ref, b_ref, o_ref):
    # x_ref: (tile_n, IN_p)  wt_ref: (IN_p, OUT_p)  b_ref: (1, OUT_p)
    acc = jnp.dot(x_ref[...], wt_ref[...], preferred_element_type=jnp.float32)
    o_ref[...] = (acc + b_ref[...]).astype(o_ref.dtype)


# ----------------------------- wrappers --------------------------------------

def _fma_forward(x, weight, bias):
    """in_features == out_features == 1: elementwise FMA on a lane-dense slab."""
    n = x.shape[0]
    rows = _round_up(max((n + _LANES - 1) // _LANES, 1), _SUBLANES)
    tile_rows = min(rows, _FMA_TILE_ROWS)
    rows = _round_up(rows, tile_rows)
    total = rows * _LANES

    # Single pad of the flat batch; no padded weight/bias/output round-trips.
    x_slab = jnp.pad(x.astype(jnp.float32).reshape(-1),
                     (0, total - n)).reshape(rows, _LANES)
    wb = jnp.concatenate(
        [weight.reshape(-1), bias.reshape(-1)]).astype(jnp.float32)

    out = pl.pallas_call(
        _fma_kernel,
        out_shape=jax.ShapeDtypeStruct((rows, _LANES), jnp.float32),
        grid=(rows // tile_rows,),
        in_specs=[
            pl.BlockSpec(memory_space=pltpu.MemorySpace.SMEM),     # [w, b]
            pl.BlockSpec((tile_rows, _LANES), lambda i: (i, 0)),   # x slab tile
        ],
        out_specs=pl.BlockSpec((tile_rows, _LANES), lambda i: (i, 0)),
        compiler_params=pltpu.CompilerParams(
            dimension_semantics=("parallel",)),
    )(wb, x_slab)

    return out.reshape(total)[:n].reshape(n, 1)


def _matmul_forward(x, weight, bias):
    """General nn.Linear: batch-tiled MXU matmul with resident W.T and bias."""
    n, in_f = x.shape
    out_f = weight.shape[0]

    in_pad = _round_up(in_f, _LANES)
    out_pad = _round_up(out_f, _LANES)
    n_pad = _round_up(n, _SUBLANES)
    tile_n = min(n_pad, _MM_TILE_ROWS)
    n_pad = _round_up(n_pad, tile_n)

    x_p = jnp.pad(x.astype(jnp.float32),
                  ((0, n_pad - n), (0, in_pad - in_f)))
    wt_p = jnp.pad(weight.astype(jnp.float32).T,
                   ((0, in_pad - in_f), (0, out_pad - out_f)))
    b_p = jnp.pad(bias.astype(jnp.float32).reshape(1, -1),
                  ((0, 0), (0, out_pad - out_f)))

    # TODO(synk): for very large in_features, also grid the K axis with a VMEM
    # accumulator instead of keeping a single (in_pad, out_pad) W block resident.
    out_p = pl.pallas_call(
        _matmul_bias_kernel,
        out_shape=jax.ShapeDtypeStruct((n_pad, out_pad), jnp.float32),
        grid=(n_pad // tile_n,),
        in_specs=[
            pl.BlockSpec((tile_n, in_pad), lambda i: (i, 0)),
            pl.BlockSpec((in_pad, out_pad), lambda i: (0, 0)),
            pl.BlockSpec((1, out_pad), lambda i: (0, 0)),
        ],
        out_specs=pl.BlockSpec((tile_n, out_pad), lambda i: (i, 0)),
        compiler_params=pltpu.CompilerParams(
            dimension_semantics=("parallel",)),
    )(x_p, wt_p, b_p)

    return out_p[:n, :out_f]


@jax.jit
def linear_regression_forward(x, weight, bias):
    """Equivalent of Linear_Regression.forward: self.linear(x).

    x: (N, IN) f32, weight: (OUT, IN) f32, bias: (OUT,) f32 -> (N, OUT) f32.
    """
    _, in_f = x.shape
    out_f = weight.shape[0]
    if in_f == 1 and out_f == 1:
        return _fma_forward(x, weight, bias)
    return _matmul_forward(x, weight, bias)


# ----------------------------- test -----------------------------------------

if __name__ == "__main__":
    key = jax.random.PRNGKey(0)
    k_w, k_b, k_x, k_w2, k_b2, k_x2 = jax.random.split(key, 6)

    # Module as used in the script: Linear_Regression(input_size=1, output_size=1)
    input_size, output_size = 1, 1
    batch = 8
    bound = 1.0 / (input_size ** 0.5)
    weight = jax.random.uniform(k_w, (output_size, input_size), jnp.float32,
                                -bound, bound)
    bias = jax.random.uniform(k_b, (output_size,), jnp.float32, -bound, bound)
    x = jax.random.normal(k_x, (batch, input_size), jnp.float32)

    pred = linear_regression_forward(x, weight, bias)
    jax.block_until_ready(pred)
    ref = x @ weight.T + bias
    assert pred.shape == (batch, output_size)
    assert jnp.allclose(pred, ref, atol=1e-5, rtol=1e-5)

    # Sanity-check the general (in>1 / out>1) matmul path as well.
    in2, out2, batch2 = 4, 3, 10
    bound2 = 1.0 / (in2 ** 0.5)
    w2 = jax.random.uniform(k_w2, (out2, in2), jnp.float32, -bound2, bound2)
    b2 = jax.random.uniform(k_b2, (out2,), jnp.float32, -bound2, bound2)
    x2 = jax.random.normal(k_x2, (batch2, in2), jnp.float32)

    pred2 = linear_regression_forward(x2, w2, b2)
    jax.block_until_ready(pred2)
    ref2 = jnp.dot(x2, w2.T, precision=jax.lax.Precision.HIGHEST) + b2
    assert pred2.shape == (batch2, out2)
    assert jnp.allclose(pred2, ref2, atol=1e-4, rtol=1e-4)

    print("KERNEL_OK")
</pallas_src>

<mosaic_0001>
module attributes {stable_mosaic.version = 11 : i64} {
  func.func @_fma_kernel(%arg0: i32, %arg1: memref<2xf32, #tpu.memory_space<smem>>, %arg2: memref<8x128xf32, #tpu.memory_space<vmem>>, %arg3: memref<8x128xf32, #tpu.memory_space<vmem>>) attributes {dimension_semantics = [#tpu.dimension_semantics<parallel>], iteration_bounds = array<i64: 1>, scalar_prefetch = 0 : i64, scratch_operands = 0 : i64, tpu.core_type = #tpu.core_type<tc>, window_params = [{transform_indices = @transform_0, window_bounds = array<i64: 2>}, {transform_indices = @transform_1, window_bounds = array<i64: 8, 128>}, {transform_indices = @transform_2, window_bounds = array<i64: 8, 128>}]} {
    %c0 = arith.constant 0 : index
    %0 = memref.load %arg1[%c0] : memref<2xf32, #tpu.memory_space<smem>>
    %c1 = arith.constant 1 : index
    %1 = memref.load %arg1[%c1] : memref<2xf32, #tpu.memory_space<smem>>
    %c0_0 = arith.constant 0 : index
    %c0_1 = arith.constant 0 : index
    %2 = vector.load %arg2[%c0_0, %c0_1] : memref<8x128xf32, #tpu.memory_space<vmem>>, vector<8x128xf32>
    %3 = vector.broadcast %0 : f32 to vector<8x128xf32>
    %4 = arith.mulf %2, %3 : vector<8x128xf32>
    %5 = vector.broadcast %1 : f32 to vector<8x128xf32>
    %6 = arith.addf %4, %5 : vector<8x128xf32>
    %c0_2 = arith.constant 0 : index
    %c0_3 = arith.constant 0 : index
    %7 = vector.load %arg3[%c0_2, %c0_3] : memref<8x128xf32, #tpu.memory_space<vmem>>, vector<8x128xf32>
    tpu.vector_store %arg3[%c0_2, %c0_3], %6 {strides = array<i32>} : memref<8x128xf32, #tpu.memory_space<vmem>>, vector<8x128xf32>,
    return
  }
  func.func @transform_0(%arg0: i32) -> i32 {
    %c0_i32 = arith.constant 0 : i32
    %c0_i32_0 = arith.constant 0 : i32
    return %c0_i32 : i32
  }
  func.func @transform_1(%arg0: i32) -> (i32, i32) {
    %c0_i32 = arith.constant 0 : i32
    %c0_i32_0 = arith.constant 0 : i32
    return %arg0, %c0_i32 : i32, i32
  }
  func.func @transform_2(%arg0: i32) -> (i32, i32) {
    %c0_i32 = arith.constant 0 : i32
    %c0_i32_0 = arith.constant 0 : i32
    return %arg0, %c0_i32 : i32, i32
  }
}

</mosaic_0001>

<llo_original>
// kernel: linear_regression_forward.1
$region0: #{linear_regression_forward.1}
  #allocation0 [shape = 'u32[]', space=smem, size = 0x4, offset = 0x4, fixed_abs, tag = 'smem constant byte address 0x4 - core index']
  #allocation1 [shape = 'u32[144,128]{1,0:T(1,128)}', space=vmem, size = 0x12000, scoped, tag = 'internal scratch']
  %s0 = inlined_call_operand.vmem [shape: f32[2], index: 0, kind: input, shape index: {}]
  %s1 = inlined_call_operand.vmem [shape: f32[8,128], index: 1, kind: input, shape index: {}]
  %s2 = inlined_call_operand.vmem [shape: f32[8,128], index: 2, kind: output, shape index: {}]
  %s3 = sld [smem:[#allocation0]]
  $region22: #{linear_regression_forward.1} parent=0
    _
  %s5 = ssub.s32 1, %s3
  %s6 = scalar_select 0, %s5, %s3
  $region1: #{linear_regression_forward.1} parent=0
    #allocation2 [shape = 'u8[512]{0}', space=smem, size = 0x200, scoped, tag = 'input window, operand 0, single buffered']
    #allocation3 [shape = 's32[1]{0}', space=sflag, size = 0x4, scoped, tag = 'scoped memory for linear_regression_forward.1']
    %7 = vsyncpa [#allocation3], 0
    // Predicated region
    $region2: #{linear_regression_forward.1} parent=1 // pred_check
      _
    $region3: #{linear_regression_forward.1} parent=1 // pred_check_branch
      %9 = sbr.rel (0) target = $region5
    $region4: #{linear_regression_forward.1} parent=1 // pred_region
      %s11 = ssub.s32 16, 16
      %12 = vsyncadd [#allocation3], %s11
      %s14 = sshll.u32 %s0, 4
      %s15 = int_to_ptr.vmem [resolvable:$true] %s14
      %17 = dma.vmem_to_smem %s15, 16, [#allocation2], [#allocation3]
    $region5: #{linear_regression_forward.1} parent=1 // pred_fallthru
      _
    // Predicated region
    $region6: #{linear_regression_forward.1} parent=1 // pred_check
      _
    $region7: #{linear_regression_forward.1} parent=1 // pred_check_branch
      %19 = sbr.rel (0) target = $region9
    $region8: #{linear_regression_forward.1} parent=1 // pred_region
      _
    $region9: #{linear_regression_forward.1} parent=1 // pred_fallthru
      _
    // Predicated region
    $region10: #{linear_regression_forward.1} parent=1 // pred_check
      _
    $region11: #{linear_regression_forward.1} parent=1 // pred_check_branch
      %21 = sbr.rel (0) target = $region13
    $region12: #{linear_regression_forward.1} parent=1 // pred_region
      %22 = dma.done [#allocation3], 16
    $region13: #{linear_regression_forward.1} parent=1 // pred_fallthru
      _
    %23 = sfence
    %s24 = sld [smem:[#allocation2]]
    %s25 = sld [smem:[#allocation2 + $0x1]]
    %v26 = vld [vmem:[%s1] sm:$0xff]
    %v27 = vstv %s24
    %v28 = vmul.f32 %v26, %v27
    %v29 = vstv %s25
    %v30 = vadd.f32 %v28, %v29
    %31 = vst [vmem:[%s2] sm:$0xff] %v30
    // Predicated region
    $region14: #{linear_regression_forward.1} parent=1 // pred_check
      _
    $region15: #{linear_regression_forward.1} parent=1 // pred_check_branch
      %33 = sbr.rel (0) target = $region17
    $region16: #{linear_regression_forward.1} parent=1 // pred_region
      _
    $region17: #{linear_regression_forward.1} parent=1 // pred_fallthru
      _
    // Predicated region
    $region18: #{linear_regression_forward.1} parent=1 // pred_check
      _
    $region19: #{linear_regression_forward.1} parent=1 // pred_check_branch
      %35 = sbr.rel (0) target = $region21
    $region20: #{linear_regression_forward.1} parent=1 // pred_region
      _
    $region21: #{linear_regression_forward.1} parent=1 // pred_fallthru
      _
    %36 = vsyncpa [#allocation3], 1

</llo_original>
